<compile_context>
chip_gen: v6e
topology: v6e:2x2x1
jax: 0.10.0
libtpu: 0.0.40
codegen_flags: <defaults>
</compile_context>

<pallas_src>
import jax
import jax.numpy as jnp
from jax import lax
from jax.experimental import pallas as pl
from jax.experimental.pallas import tpu as pltpu

IN_DIM = 11
KERNEL_SIZE = 2
LAYERS = 2
PADDING_LIST = [KERNEL_SIZE ** (i + 1) - KERNEL_SIZE ** i for i in range(LAYERS)]  # [1, 2]
PADDING = sum(PADDING_LIST)                                                         # 3
C1 = IN_DIM * (PADDING_LIST[0] + 1)          # 22
C2 = IN_DIM * (sum(PADDING_LIST) + 1)        # 44
DIL1 = KERNEL_SIZE ** 1                      # 2

MAX_TILE_T = 8192        # time-tile cap: big enough for HBM roofline, fits v5e scoped VMEM
LANE_QUANTUM = 512       # multi-tile tile_t multiple => halo_ratio integral, lane-dense stores
MIN_GRID_STEPS = 8       # keep both v7x TensorCores busy
MAX_BATCH_BLOCK = 8      # batch rows folded per grid step for short-T workloads


def _fused_causal_conv_kernel(x_ref, halo_ref, w_ref, b_ref, o_ref):
    # x_ref    : (bt, IN_DIM, tile_t)  current time tile (NCW, time on lanes)
    # halo_ref : (bt, IN_DIM, halo_w)  block whose LAST 3 columns precede this tile
    # w_ref    : (4, C2, IN_DIM)       fused taps; tap k multiplies x[t - (3 - k)]
    # b_ref    : (C2, 1)               fused bias
    # o_ref    : (bt, C2, tile_t)
    t = pl.program_id(1)
    bt, _, tile_t = x_ref.shape
    halo_w = halo_ref.shape[2]

    w0, w1, w2, w3 = w_ref[0], w_ref[1], w_ref[2], w_ref[3]   # (C2, IN_DIM) each
    bias = b_ref[...]                                         # (C2, 1)
    left_valid = (t > 0).astype(o_ref.dtype)                  # first tile => causal zero pad

    for b in range(bt):                    # static unroll over batch rows in this block
        cur = x_ref[b]                                            # (IN_DIM, tile_t)
        halo = halo_ref[b][:, halo_w - PADDING:] * left_valid     # (IN_DIM, 3)
        # win[:, j] == x[:, tile_start - 3 + j]
        win = jnp.concatenate([halo, cur], axis=-1)               # (IN_DIM, tile_t + 3)
        out = jnp.dot(w0, win[:, 0:tile_t], preferred_element_type=jnp.float32)
        out = out + jnp.dot(w1, win[:, 1:tile_t + 1], preferred_element_type=jnp.float32)
        out = out + jnp.dot(w2, win[:, 2:tile_t + 2], preferred_element_type=jnp.float32)
        out = out + jnp.dot(w3, cur, preferred_element_type=jnp.float32)  # == win[:, 3:]
        o_ref[b] = (out + bias).astype(o_ref.dtype)


def _largest_divisor_leq(n, cap):
    for d in range(min(n, cap), 0, -1):
        if n % d == 0:
            return d
    return 1


def causal_dil_conv1d(x, w0, b0, w1, b1, *, max_tile_t=MAX_TILE_T):
    """x: (B, IN_DIM, T) float32 -> (B, C2, T) float32.  Weights in PyTorch layout."""
    B, cin, T = x.shape
    assert cin == IN_DIM

    # Tiny sequences (shorter than the receptive field): left-pad once with the
    # causal zeros and slice, keeping the kernel's static window slicing well-formed.
    if T <= PADDING:
        xp = jnp.pad(x, ((0, 0), (0, 0), (PADDING, 0)))
        return causal_dil_conv1d(xp, w0, b0, w1, b1,
                                 max_tile_t=max_tile_t)[:, :, PADDING:]

    # --- one-time algebraic fusion of conv1(dil=2) o conv0(k=2) into 4 causal taps ---
    w0a, w0b = w0[:, :, 0], w0[:, :, 1]                  # (C1, IN_DIM)
    w1a, w1b = w1[:, :, 0], w1[:, :, 1]                  # (C2, C1)
    taps = jnp.stack([w1a @ w0a,                         # multiplies x[t-3]
                      w1a @ w0b,                         # x[t-2]
                      w1b @ w0a,                         # x[t-1]
                      w1b @ w0b],                        # x[t]
                     axis=0).astype(jnp.float32)         # (4, C2, IN_DIM)
    b_eff = ((w1a + w1b) @ b0 + b1)[:, None].astype(jnp.float32)   # (C2, 1)

    # --- time tiling (lane axis) ------------------------------------------------
    if T <= max_tile_t:
        tile_t, n_t = T, 1                               # single full-extent time tile
    else:
        # Big tiles amortize the ~0.35us per-step overhead, but keep enough total
        # grid steps (>= ~MIN_GRID_STEPS) so both v7x TensorCores get work.
        want_tiles = max(1, -(-MIN_GRID_STEPS // B))     # ceil(MIN_GRID_STEPS / B)
        cand = -(-T // want_tiles)
        cand = -(-cand // LANE_QUANTUM) * LANE_QUANTUM
        tile_t = int(max(LANE_QUANTUM, min(max_tile_t, cand)))
        n_t = -(-T // tile_t)

    # Halo block: small block whose LAST 3 columns precede the current tile.
    if n_t == 1:
        halo_blk = T if T < 128 else 128                 # halo unused (zero-masked) here
        halo_ratio = 1
    else:
        halo_blk = 128                                   # tile_t % 512 == 0 => divisible
        halo_ratio = tile_t // halo_blk

    # --- batch blocking: amortize grid overhead for short-T / large-B workloads ---
    if n_t == 1:
        cap = max(1, MAX_TILE_T // max(tile_t, 1))       # keep bt*tile_t VMEM-bounded
        bt = _largest_divisor_leq(B, min(MAX_BATCH_BLOCK, cap))
    else:
        bt = 1
    grid = (B // bt, n_t)

    out = pl.pallas_call(
        _fused_causal_conv_kernel,
        out_shape=jax.ShapeDtypeStruct((B, C2, T), jnp.float32),
        grid=grid,
        in_specs=[
            # current time tile
            pl.BlockSpec((bt, IN_DIM, tile_t), lambda b, t: (b, 0, t)),
            # block containing the 3 samples just before this tile (clamped at t=0,
            # where it is zero-masked inside the kernel)
            pl.BlockSpec((bt, IN_DIM, halo_blk),
                         lambda b, t, _r=halo_ratio: (b, 0, jnp.maximum(t * _r - 1, 0))),
            pl.BlockSpec((4, C2, IN_DIM), lambda b, t: (0, 0, 0)),
            pl.BlockSpec((C2, 1), lambda b, t: (0, 0)),
        ],
        out_specs=pl.BlockSpec((bt, C2, tile_t), lambda b, t: (b, 0, t)),
        compiler_params=pltpu.CompilerParams(
            dimension_semantics=("parallel", "parallel")),
    )(x, x, taps, b_eff)

    return out


def _ref_forward(x, w0, b0, w1, b1):
    """Pure-JAX reference matching PyTorch exactly (NCW convs + final slice)."""
    dn0 = lax.conv_dimension_numbers(x.shape, w0.shape, ('NCH', 'OIH', 'NCH'))
    y = lax.conv_general_dilated(x, w0, window_strides=(1,),
                                 padding=[(PADDING, PADDING)],
                                 dimension_numbers=dn0) + b0[None, :, None]
    dn1 = lax.conv_dimension_numbers(y.shape, w1.shape, ('NCH', 'OIH', 'NCH'))
    y = lax.conv_general_dilated(y, w1, window_strides=(1,),
                                 padding=[(0, 0)], rhs_dilation=(DIL1,),
                                 dimension_numbers=dn1) + b1[None, :, None]
    return y[:, :, :-PADDING]


if __name__ == "__main__":
    key = jax.random.PRNGKey(0)
    kx, k0, k1, kb0, kb1, kx2, kx3 = jax.random.split(key, 7)

    # Deterministic parameter init mimicking nn.Conv1d default (uniform +-1/sqrt(fan_in*k))
    bound0 = 1.0 / (IN_DIM * KERNEL_SIZE) ** 0.5
    bound1 = 1.0 / (C1 * KERNEL_SIZE) ** 0.5
    w0 = jax.random.uniform(k0, (C1, IN_DIM, KERNEL_SIZE), jnp.float32, -bound0, bound0)
    b0 = jax.random.uniform(kb0, (C1,), jnp.float32, -bound0, bound0)
    w1 = jax.random.uniform(k1, (C2, C1, KERNEL_SIZE), jnp.float32, -bound1, bound1)
    b1 = jax.random.uniform(kb1, (C2,), jnp.float32, -bound1, bound1)

    def check(x, **kw):
        out = jax.block_until_ready(causal_dil_conv1d(x, w0, b0, w1, b1, **kw))
        ref = jax.block_until_ready(_ref_forward(x, w0, b0, w1, b1))
        assert out.shape == ref.shape, (out.shape, ref.shape)
        err = float(jnp.max(jnp.abs(out - ref)))
        assert jnp.allclose(out, ref, atol=1e-4, rtol=1e-4), err

    # Small shape consistent with the module (B, C=11, T): single-tile, batch-blocked path.
    x = jax.random.normal(kx, (2, IN_DIM, 16), dtype=jnp.float32)
    check(x)

    # Multi-tile path with cross-tile halo AND a partial (T % tile_t != 0) last
    # time tile — forced small max_tile_t keeps the test shape small.
    x2 = jax.random.normal(kx2, (2, IN_DIM, 1200), dtype=jnp.float32)
    check(x2, max_tile_t=512)

    # Tiny sequence shorter than the receptive field (T < 3 fallback path).
    x3 = jax.random.normal(kx3, (1, IN_DIM, 2), dtype=jnp.float32)
    check(x3)

    print("KERNEL_OK")
</pallas_src>

<mosaic_0001>
module attributes {stable_mosaic.version = 11 : i64} {
  func.func @_fused_causal_conv_kernel(%arg0: i32, %arg1: i32, %arg2: memref<2x11x16xf32, #tpu.memory_space<vmem>>, %arg3: memref<2x11x16xf32, #tpu.memory_space<vmem>>, %arg4: memref<4x44x11xf32, #tpu.memory_space<vmem>>, %arg5: memref<44x1xf32, #tpu.memory_space<vmem>>, %arg6: memref<2x44x16xf32, #tpu.memory_space<vmem>>) attributes {dimension_semantics = [#tpu.dimension_semantics<parallel>, #tpu.dimension_semantics<parallel>], iteration_bounds = array<i64: 1, 1>, scalar_prefetch = 0 : i64, scratch_operands = 0 : i64, tpu.core_type = #tpu.core_type<tc>, window_params = [{transform_indices = @transform_0, window_bounds = array<i64: 2, 11, 16>}, {transform_indices = @transform_1, window_bounds = array<i64: 2, 11, 16>}, {pipeline_mode = #tpu.pipeline_mode<synchronous>, transform_indices = @transform_2, window_bounds = array<i64: 4, 44, 11>}, {pipeline_mode = #tpu.pipeline_mode<synchronous>, transform_indices = @transform_3, window_bounds = array<i64: 44, 1>}, {transform_indices = @transform_4, window_bounds = array<i64: 2, 44, 16>}]} {
    %c0 = arith.constant 0 : index
    %c0_0 = arith.constant 0 : index
    %c0_1 = arith.constant 0 : index
    %0 = vector.load %arg4[%c0, %c0_0, %c0_1] : memref<4x44x11xf32, #tpu.memory_space<vmem>>, vector<1x44x11xf32>
    %1 = vector.shape_cast %0 : vector<1x44x11xf32> to vector<44x11xf32>
    %c1 = arith.constant 1 : index
    %c0_2 = arith.constant 0 : index
    %c0_3 = arith.constant 0 : index
    %2 = vector.load %arg4[%c1, %c0_2, %c0_3] : memref<4x44x11xf32, #tpu.memory_space<vmem>>, vector<1x44x11xf32>
    %3 = vector.shape_cast %2 : vector<1x44x11xf32> to vector<44x11xf32>
    %c2 = arith.constant 2 : index
    %c0_4 = arith.constant 0 : index
    %c0_5 = arith.constant 0 : index
    %4 = vector.load %arg4[%c2, %c0_4, %c0_5] : memref<4x44x11xf32, #tpu.memory_space<vmem>>, vector<1x44x11xf32>
    %5 = vector.shape_cast %4 : vector<1x44x11xf32> to vector<44x11xf32>
    %c3 = arith.constant 3 : index
    %c0_6 = arith.constant 0 : index
    %c0_7 = arith.constant 0 : index
    %6 = vector.load %arg4[%c3, %c0_6, %c0_7] : memref<4x44x11xf32, #tpu.memory_space<vmem>>, vector<1x44x11xf32>
    %7 = vector.shape_cast %6 : vector<1x44x11xf32> to vector<44x11xf32>
    %c0_8 = arith.constant 0 : index
    %c0_9 = arith.constant 0 : index
    %8 = vector.load %arg5[%c0_8, %c0_9] : memref<44x1xf32, #tpu.memory_space<vmem>>, vector<44x1xf32>
    %c0_i32 = arith.constant 0 : i32
    %9 = arith.cmpi sgt, %arg1, %c0_i32 : i32
    %10 = arith.extui %9 : i1 to i32
    %11 = arith.sitofp %10 : i32 to f32
    %c0_10 = arith.constant 0 : index
    %c0_11 = arith.constant 0 : index
    %c0_12 = arith.constant 0 : index
    %12 = vector.load %arg2[%c0_10, %c0_11, %c0_12] : memref<2x11x16xf32, #tpu.memory_space<vmem>>, vector<1x11x16xf32>
    %13 = vector.shape_cast %12 : vector<1x11x16xf32> to vector<11x16xf32>
    %c0_13 = arith.constant 0 : index
    %c0_14 = arith.constant 0 : index
    %c0_15 = arith.constant 0 : index
    %14 = vector.load %arg3[%c0_13, %c0_14, %c0_15] : memref<2x11x16xf32, #tpu.memory_space<vmem>>, vector<1x11x16xf32>
    %15 = vector.shape_cast %14 : vector<1x11x16xf32> to vector<11x16xf32>
    %16 = vector.extract_strided_slice %15 {offsets = [0, 13], sizes = [11, 3], strides = [1, 1]} : vector<11x16xf32> to vector<11x3xf32>
    %17 = vector.broadcast %11 : f32 to vector<11x3xf32>
    %18 = arith.mulf %16, %17 : vector<11x3xf32>
    %19 = tpu.concatenate %18, %13 in 1 : vector<11x3xf32>, vector<11x16xf32> -> vector<11x19xf32>
    %20 = vector.extract_strided_slice %19 {offsets = [0, 0], sizes = [11, 16], strides = [1, 1]} : vector<11x19xf32> to vector<11x16xf32>
    %cst = arith.constant dense<0.000000e+00> : vector<44x16xf32>
    %21 = tpu.matmul %1, %20, %cst {dimension_numbers = #tpu.dot_dimension_numbers<[1], [0], [0], [1], [0, 0, 1, 1], [], []>} : vector<44x11xf32>, vector<11x16xf32>, vector<44x16xf32> -> vector<44x16xf32>
    %22 = vector.extract_strided_slice %19 {offsets = [0, 1], sizes = [11, 16], strides = [1, 1]} : vector<11x19xf32> to vector<11x16xf32>
    %cst_16 = arith.constant dense<0.000000e+00> : vector<44x16xf32>
    %23 = tpu.matmul %3, %22, %cst_16 {dimension_numbers = #tpu.dot_dimension_numbers<[1], [0], [0], [1], [0, 0, 1, 1], [], []>} : vector<44x11xf32>, vector<11x16xf32>, vector<44x16xf32> -> vector<44x16xf32>
    %24 = arith.addf %21, %23 : vector<44x16xf32>
    %25 = vector.extract_strided_slice %19 {offsets = [0, 2], sizes = [11, 16], strides = [1, 1]} : vector<11x19xf32> to vector<11x16xf32>
    %cst_17 = arith.constant dense<0.000000e+00> : vector<44x16xf32>
    %26 = tpu.matmul %5, %25, %cst_17 {dimension_numbers = #tpu.dot_dimension_numbers<[1], [0], [0], [1], [0, 0, 1, 1], [], []>} : vector<44x11xf32>, vector<11x16xf32>, vector<44x16xf32> -> vector<44x16xf32>
    %27 = arith.addf %24, %26 : vector<44x16xf32>
    %cst_18 = arith.constant dense<0.000000e+00> : vector<44x16xf32>
    %28 = tpu.matmul %7, %13, %cst_18 {dimension_numbers = #tpu.dot_dimension_numbers<[1], [0], [0], [1], [0, 0, 1, 1], [], []>} : vector<44x11xf32>, vector<11x16xf32>, vector<44x16xf32> -> vector<44x16xf32>
    %29 = arith.addf %27, %28 : vector<44x16xf32>
    %30 = vector.broadcast %8 : vector<44x1xf32> to vector<44x16xf32>
    %31 = arith.addf %29, %30 : vector<44x16xf32>
    %c0_19 = arith.constant 0 : index
    %c0_20 = arith.constant 0 : index
    %c0_21 = arith.constant 0 : index
    %32 = vector.load %arg6[%c0_19, %c0_20, %c0_21] : memref<2x44x16xf32, #tpu.memory_space<vmem>>, vector<1x44x16xf32>
    %33 = vector.shape_cast %32 : vector<1x44x16xf32> to vector<44x16xf32>
    %34 = vector.shape_cast %31 : vector<44x16xf32> to vector<1x44x16xf32>
    tpu.vector_store %arg6[%c0_19, %c0_20, %c0_21], %34 {strides = array<i32>} : memref<2x44x16xf32, #tpu.memory_space<vmem>>, vector<1x44x16xf32>,
    %c1_22 = arith.constant 1 : index
    %c0_23 = arith.constant 0 : index
    %c0_24 = arith.constant 0 : index
    %35 = vector.load %arg2[%c1_22, %c0_23, %c0_24] : memref<2x11x16xf32, #tpu.memory_space<vmem>>, vector<1x11x16xf32>
    %36 = vector.shape_cast %35 : vector<1x11x16xf32> to vector<11x16xf32>
    %c1_25 = arith.constant 1 : index
    %c0_26 = arith.constant 0 : index
    %c0_27 = arith.constant 0 : index
    %37 = vector.load %arg3[%c1_25, %c0_26, %c0_27] : memref<2x11x16xf32, #tpu.memory_space<vmem>>, vector<1x11x16xf32>
    %38 = vector.shape_cast %37 : vector<1x11x16xf32> to vector<11x16xf32>
    %39 = vector.extract_strided_slice %38 {offsets = [0, 13], sizes = [11, 3], strides = [1, 1]} : vector<11x16xf32> to vector<11x3xf32>
    %40 = vector.broadcast %11 : f32 to vector<11x3xf32>
    %41 = arith.mulf %39, %40 : vector<11x3xf32>
    %42 = tpu.concatenate %41, %36 in 1 : vector<11x3xf32>, vector<11x16xf32> -> vector<11x19xf32>
    %43 = vector.extract_strided_slice %42 {offsets = [0, 0], sizes = [11, 16], strides = [1, 1]} : vector<11x19xf32> to vector<11x16xf32>
    %cst_28 = arith.constant dense<0.000000e+00> : vector<44x16xf32>
    %44 = tpu.matmul %1, %43, %cst_28 {dimension_numbers = #tpu.dot_dimension_numbers<[1], [0], [0], [1], [0, 0, 1, 1], [], []>} : vector<44x11xf32>, vector<11x16xf32>, vector<44x16xf32> -> vector<44x16xf32>
    %45 = vector.extract_strided_slice %42 {offsets = [0, 1], sizes = [11, 16], strides = [1, 1]} : vector<11x19xf32> to vector<11x16xf32>
    %cst_29 = arith.constant dense<0.000000e+00> : vector<44x16xf32>
    %46 = tpu.matmul %3, %45, %cst_29 {dimension_numbers = #tpu.dot_dimension_numbers<[1], [0], [0], [1], [0, 0, 1, 1], [], []>} : vector<44x11xf32>, vector<11x16xf32>, vector<44x16xf32> -> vector<44x16xf32>
    %47 = arith.addf %44, %46 : vector<44x16xf32>
    %48 = vector.extract_strided_slice %42 {offsets = [0, 2], sizes = [11, 16], strides = [1, 1]} : vector<11x19xf32> to vector<11x16xf32>
    %cst_30 = arith.constant dense<0.000000e+00> : vector<44x16xf32>
    %49 = tpu.matmul %5, %48, %cst_30 {dimension_numbers = #tpu.dot_dimension_numbers<[1], [0], [0], [1], [0, 0, 1, 1], [], []>} : vector<44x11xf32>, vector<11x16xf32>, vector<44x16xf32> -> vector<44x16xf32>
    %50 = arith.addf %47, %49 : vector<44x16xf32>
    %cst_31 = arith.constant dense<0.000000e+00> : vector<44x16xf32>
    %51 = tpu.matmul %7, %36, %cst_31 {dimension_numbers = #tpu.dot_dimension_numbers<[1], [0], [0], [1], [0, 0, 1, 1], [], []>} : vector<44x11xf32>, vector<11x16xf32>, vector<44x16xf32> -> vector<44x16xf32>
    %52 = arith.addf %50, %51 : vector<44x16xf32>
    %53 = vector.broadcast %8 : vector<44x1xf32> to vector<44x16xf32>
    %54 = arith.addf %52, %53 : vector<44x16xf32>
    %c1_32 = arith.constant 1 : index
    %c0_33 = arith.constant 0 : index
    %c0_34 = arith.constant 0 : index
    %55 = vector.load %arg6[%c1_32, %c0_33, %c0_34] : memref<2x44x16xf32, #tpu.memory_space<vmem>>, vector<1x44x16xf32>
    %56 = vector.shape_cast %55 : vector<1x44x16xf32> to vector<44x16xf32>
    %57 = vector.shape_cast %54 : vector<44x16xf32> to vector<1x44x16xf32>
    tpu.vector_store %arg6[%c1_32, %c0_33, %c0_34], %57 {strides = array<i32>} : memref<2x44x16xf32, #tpu.memory_space<vmem>>, vector<1x44x16xf32>,
    return
  }
  func.func @transform_0(%arg0: i32, %arg1: i32) -> (i32, i32, i32) {
    %c0_i32 = arith.constant 0 : i32
    %c0_i32_0 = arith.constant 0 : i32
    return %arg0, %c0_i32, %arg1 : i32, i32, i32
  }
  func.func @transform_1(%arg0: i32, %arg1: i32) -> (i32, i32, i32) {
    %c1_i32 = arith.constant 1 : i32
    %0 = arith.muli %arg1, %c1_i32 : i32
    %c1_i32_0 = arith.constant 1 : i32
    %1 = arith.subi %0, %c1_i32_0 : i32
    %c0_i32 = arith.constant 0 : i32
    %2 = arith.maxsi %1, %c0_i32 : i32
    %c0_i32_1 = arith.constant 0 : i32
    %c0_i32_2 = arith.constant 0 : i32
    return %arg0, %c0_i32_1, %2 : i32, i32, i32
  }
  func.func @transform_2(%arg0: i32, %arg1: i32) -> (i32, i32, i32) {
    %c0_i32 = arith.constant 0 : i32
    %c0_i32_0 = arith.constant 0 : i32
    %c0_i32_1 = arith.constant 0 : i32
    %c0_i32_2 = arith.constant 0 : i32
    return %c0_i32, %c0_i32_0, %c0_i32_1 : i32, i32, i32
  }
  func.func @transform_3(%arg0: i32, %arg1: i32) -> (i32, i32) {
    %c0_i32 = arith.constant 0 : i32
    %c0_i32_0 = arith.constant 0 : i32
    %c0_i32_1 = arith.constant 0 : i32
    return %c0_i32, %c0_i32_0 : i32, i32
  }
  func.func @transform_4(%arg0: i32, %arg1: i32) -> (i32, i32, i32) {
    %c0_i32 = arith.constant 0 : i32
    %c0_i32_0 = arith.constant 0 : i32
    return %arg0, %c0_i32, %arg1 : i32, i32, i32
  }
}

</mosaic_0001>

<llo_original>
// kernel: tpu_custom_call.1
$region0: #{tpu_custom_call.1}
  #allocation0 [shape = 'u32[]', space=smem, size = 0x4, offset = 0x4, fixed_abs, tag = 'smem constant byte address 0x4 - core index']
  #allocation1 [shape = 'u32[144,128]{1,0:T(1,128)}', space=vmem, size = 0x12000, scoped, tag = 'internal scratch']
  %s0 = inlined_call_operand.vmem [shape: f32[2,11,16], index: 0, kind: input, shape index: {}]
  %s1 = inlined_call_operand.vmem [shape: f32[2,11,16], index: 1, kind: input, shape index: {}]
  %s2 = inlined_call_operand.vmem [shape: f32[4,44,11], index: 2, kind: input, shape index: {}]
  %s3 = inlined_call_operand.vmem [shape: f32[44,1], index: 3, kind: input, shape index: {}]
  %s4 = inlined_call_operand.vmem [shape: f32[2,44,16], index: 4, kind: output, shape index: {}]
  %s5 = sld [smem:[#allocation0]]
  $region26: #{tpu_custom_call.1} parent=0
    _
  %s7 = ssub.s32 1, %s5
  %s8 = scalar_select 0, %s7, %s5
  // Predicated region
  $region2: #{tpu_custom_call.1} parent=0 // pred_check
    _
  $region3: #{tpu_custom_call.1} parent=0 // pred_check_branch
    %10 = sbr.rel (0) target = $region5
  $region4: #{tpu_custom_call.1} parent=0 // pred_region
    _
  $region5: #{tpu_custom_call.1} parent=0 // pred_fallthru
    _
  // Predicated region
  $region6: #{tpu_custom_call.1} parent=0 // pred_check
    _
  $region7: #{tpu_custom_call.1} parent=0 // pred_check_branch
    %12 = sbr.rel (0) target = $region9
  $region8: #{tpu_custom_call.1} parent=0 // pred_region
    %s13 = ssub.s32 0, 1
    %p14 = scmp.gt.s32.totalorder %s13, 0
    %s15 = scalar_select %p14, %s13, 0
    %p16 = scmp.lt.s32.totalorder %s15, 0
    %s17 = scalar_select %p16, %s15, 0
    %s18 = smul.addr %s17, 8
    %s19 = scalar_lea.vmem %s1, %s18
    %s20 = ssub.s32 0, 1
    %p21 = scmp.gt.s32.totalorder %s20, 0
    %s22 = scalar_select %p21, %s20, 0
  $region9: #{tpu_custom_call.1} parent=0 // pred_fallthru
    _
  // Predicated region
  $region10: #{tpu_custom_call.1} parent=0 // pred_check
    _
  $region11: #{tpu_custom_call.1} parent=0 // pred_check_branch
    %24 = sbr.rel (0) target = $region13
  $region12: #{tpu_custom_call.1} parent=0 // pred_region
    _
  $region13: #{tpu_custom_call.1} parent=0 // pred_fallthru
    _
  // Predicated region
  $region14: #{tpu_custom_call.1} parent=0 // pred_check
    _
  $region15: #{tpu_custom_call.1} parent=0 // pred_check_branch
    %26 = sbr.rel (0) target = $region17
  $region16: #{tpu_custom_call.1} parent=0 // pred_region
    _
  $region17: #{tpu_custom_call.1} parent=0 // pred_fallthru
    _
  %s27 = ssub.s32 0, 1
  %p28 = scmp.gt.s32.totalorder %s27, 0
  %s29 = scalar_select %p28, %s27, 0
  %p30 = scmp.lt.s32.totalorder %s29, 0
  %s31 = scalar_select %p30, %s29, 0
  %s32 = smul.addr %s31, 8
  %s33 = scalar_lea.vmem %s1, %s32
  %s34 = ssub.s32 0, 1
  %p35 = scmp.gt.s32.totalorder %s34, 0
  %s36 = scalar_select %p35, %s34, 0
  %p37 = scmp.lt.s32.totalorder %s36, 0
  %s38 = scalar_select %p37, %s36, 0
  %s39 = smul.addr %s38, 8
  %s40 = scalar_lea.vmem %s1, %s39
  %s41 = ssub.s32 0, 1
  %p42 = scmp.gt.s32.totalorder %s41, 0
  %s43 = scalar_select %p42, %s41, 0
  %v44 = vld [vmem:[%s2] sm:$0xff]
  %v45 = vld [vmem:[%s2 + $0x8] sm:$0xff]
  %v46 = vld [vmem:[%s2 + $0x10] sm:$0xff]
  %v47 = vld [vmem:[%s2 + $0x18] sm:$0xff]
  %v48 = vld [vmem:[%s2 + $0x20] sm:$0xff]
  %v49 = vld [vmem:[%s2 + $0x28] sm:$0xf]
  %s50 = scalar_lea.vmem %s2, 48
  %v51 = vld [vmem:[%s50] sm:$0xff]
  %v52 = vld [vmem:[%s50 + $0x8] sm:$0xff]
  %v53 = vld [vmem:[%s50 + $0x10] sm:$0xff]
  %v54 = vld [vmem:[%s50 + $0x18] sm:$0xff]
  %v55 = vld [vmem:[%s50 + $0x20] sm:$0xff]
  %v56 = vld [vmem:[%s50 + $0x28] sm:$0xf]
  %s57 = scalar_lea.vmem %s2, 96
  %v58 = vld [vmem:[%s57] sm:$0xff]
  %v59 = vld [vmem:[%s57 + $0x8] sm:$0xff]
  %v60 = vld [vmem:[%s57 + $0x10] sm:$0xff]
  %v61 = vld [vmem:[%s57 + $0x18] sm:$0xff]
  %v62 = vld [vmem:[%s57 + $0x20] sm:$0xff]
  %v63 = vld [vmem:[%s57 + $0x28] sm:$0xf]
  %s64 = scalar_lea.vmem %s2, 144
  %v65 = vld [vmem:[%s64] sm:$0xff]
  %v66 = vld [vmem:[%s64 + $0x8] sm:$0xff]
  %v67 = vld [vmem:[%s64 + $0x10] sm:$0xff]
  %v68 = vld [vmem:[%s64 + $0x18] sm:$0xff]
  %v69 = vld [vmem:[%s64 + $0x20] sm:$0xff]
  %v70 = vld [vmem:[%s64 + $0x28] sm:$0xf]
  %v71 = vld [vmem:[%s3] sm:$0xff]
  %v72 = vld [vmem:[%s3 + $0x8] sm:$0xff]
  %v73 = vld [vmem:[%s3 + $0x10] sm:$0xff]
  %v74 = vld [vmem:[%s3 + $0x18] sm:$0xff]
  %v75 = vld [vmem:[%s3 + $0x20] sm:$0xff]
  %v76 = vld [vmem:[%s3 + $0x28] sm:$0xf]
  %p77 = scmp.gt.s32.totalorder 0, 0
  %s78 = scalar_select %p77, 1, 0
  %s79 = scvt.s32.f32 %s78
  %v80 = vld [vmem:[%s0] sm:$0xff]
  %v81 = vld [vmem:[%s0 + $0x8] sm:$0x7]
  %v82 = vld [vmem:[%s40] sm:$0xff]
  %v83 = vld [vmem:[%s40 + $0x8] sm:$0x7]
  %v84 = vstv %s79
  %v85 = vmul.f32 %v82, %v84
  %v86 = vmul.f32 %v83, %v84
  %89 = vrot.lane.b32.xlu0 %v85, 115
  %v90 = vpop.permute.xlu0 %89
  %91 = vrot.lane.b32.xlu0 %v86, 115
  %v92 = vpop.permute.xlu0 %91
  %97 = vrot.lane.b32.xlu0 %v80, 3
  %v98 = vpop.permute.xlu0 %97
  %99 = vrot.lane.b32.xlu0 %v81, 3
  %v100 = vpop.permute.xlu0 %99
  %vm103 = vcmask 23552
  %v104 = vsel %vm103, %v90, %v98
  %v105 = vsel %vm103, %v92, %v100
  %108 = vrot.lane.b32.xlu0 %v104, 127
  %v109 = vpop.permute.xlu0 %108
  %110 = vrot.lane.b32.xlu0 %v105, 127
  %v111 = vpop.permute.xlu0 %110
  %vm113 = vcmask 89088
  %v115 = vsel %vm113, %v51, 0
  %v118 = vsel %vm113, %v52, 0
  %v121 = vsel %vm113, %v53, 0
  %v124 = vsel %vm113, %v54, 0
  %v127 = vsel %vm113, %v55, 0
  %v130 = vsel %vm113, %v56, 0
  %vm132 = vcmask 1042432
  %v133 = vsel %vm132, %v111, 0
  %135 = vmatprep.subr.mxu0 0.0
  %136 = vmatpush1.msra.mxu0 0.0
  %137 = vmatprep.subr.mxu0 0.0
  %138 = vmatpush1.msra.mxu0 0.0
  %139 = vmatprep.subr.mxu0 0.0
  %140 = vmatpush1.msra.mxu0 0.0
  %141 = vmatprep.subr.mxu0 0.0
  %142 = vmatpush1.msra.mxu0 0.0
  %143 = vmatprep.subr.mxu0 0.0
  %144 = vmatpush1.msra.mxu0 0.0
  %145 = vmatprep.subr.mxu0 0.0
  %146 = vmatpush1.msra.mxu0 0.0
  %147 = vmatprep.subr.mxu0 0.0
  %148 = vmatpush1.msra.mxu0 0.0
  %149 = vmatprep.subr.mxu0 0.0
  %150 = vmatpush1.msra.mxu0 0.0
  %151 = vmatprep.subr.mxu0 0.0
  %152 = vmatpush1.msra.mxu0 0.0
  %153 = vmatprep.subr.mxu0 0.0
  %154 = vmatpush1.msra.mxu0 0.0
  %155 = vmatprep.subr.mxu0 0.0
  %156 = vmatpush1.msra.mxu0 0.0
  %157 = vmatprep.subr.mxu0 0.0
  %158 = vmatpush1.msra.mxu0 0.0
  %159 = vmatprep.subr.mxu0 0.0
  %160 = vmatpush1.msra.mxu0 0.0
  %161 = vmatprep.subr.mxu0 0.0
  %162 = vmatpush1.msra.mxu0 0.0
  %163 = vmatprep.subr.mxu0 0.0
  %164 = vmatpush1.msra.mxu0 %v133
  %165 = vmatprep.subr.mxu0 0.0
  %166 = vmatpush1.msra.mxu0 %v109
  %167 = vmatprep.subr.mxu0 0.0
  %168 = vmatpush2.msra.mxu0 0.0
  %169 = vmatprep.subr.mxu0 0.0
  %170 = vmatpush2.msra.mxu0 0.0
  %171 = vmatprep.subr.mxu0 0.0
  %172 = vmatpush2.msra.mxu0 0.0
  %173 = vmatprep.subr.mxu0 0.0
  %174 = vmatpush2.msra.mxu0 0.0
  %175 = vmatprep.subr.mxu0 0.0
  %176 = vmatpush2.msra.mxu0 0.0
  %177 = vmatprep.subr.mxu0 0.0
  %178 = vmatpush2.msra.mxu0 0.0
  %179 = vmatprep.subr.mxu0 0.0
  %180 = vmatpush2.msra.mxu0 0.0
  %181 = vmatprep.subr.mxu0 0.0
  %182 = vmatpush2.msra.mxu0 0.0
  %183 = vmatprep.subr.mxu0 0.0
  %184 = vmatpush2.msra.mxu0 0.0
  %185 = vmatprep.subr.mxu0 0.0
  %186 = vmatpush2.msra.mxu0 0.0
  %187 = vmatprep.subr.mxu0 0.0
  %188 = vmatpush2.msra.mxu0 0.0
  %189 = vmatprep.subr.mxu0 0.0
  %190 = vmatpush2.msra.mxu0 0.0
  %191 = vmatprep.subr.mxu0 0.0
  %192 = vmatpush2.msra.mxu0 0.0
  %193 = vmatprep.subr.mxu0 0.0
  %194 = vmatpush2.msra.mxu0 0.0
  %195 = vmatprep.subr.mxu0 0.0
  %196 = vmatpush2.msra.mxu0 0.0
  %197 = vmatprep.subr.mxu0 0.0
  %198 = vmatpush2.msra.mxu0 0.0
  %199 = vmatprep.mubr.f32.mxu0 0.0
  %200 = vmatmul.mubr.f32.gmra.mxu0 %v115
  %v201 = vpop.f32.mrf.mxu0
  %v202 = vadd.f32 0.0, %v201
  %v203 = vpop.f32.mrf.mxu0
  %204 = vmatprep.mubr.f32.mxu0 0.0
  %205 = vmatmul.mubr.f32.gmra.mxu0 %v118
  %v206 = vpop.f32.mrf.mxu0
  %v207 = vadd.f32 0.0, %v206
  %v208 = vpop.f32.mrf.mxu0
  %209 = vmatprep.mubr.f32.mxu0 0.0
  %210 = vmatmul.mubr.f32.gmra.mxu0 %v121
  %v211 = vpop.f32.mrf.mxu0
  %v212 = vadd.f32 0.0, %v211
  %v213 = vpop.f32.mrf.mxu0
  %214 = vmatprep.mubr.f32.mxu0 0.0
  %215 = vmatmul.mubr.f32.gmra.mxu0 %v124
  %v216 = vpop.f32.mrf.mxu0
  %v217 = vadd.f32 0.0, %v216
  %v218 = vpop.f32.mrf.mxu0
  %219 = vmatprep.mubr.f32.mxu0 0.0
  %220 = vmatmul.mubr.f32.gmra.mxu0 %v127
  %v221 = vpop.f32.mrf.mxu0
  %v222 = vadd.f32 0.0, %v221
  %v223 = vpop.f32.mrf.mxu0
  %224 = vmatprep.mubr.f32.mxu0 0.0
  %225 = vmatmul.mubr.f32.gmra.mxu0 %v130
  %v226 = vpop.f32.mrf.mxu0
  %v227 = vadd.f32 0.0, %v226
  %v228 = vpop.f32.mrf.mxu0
  %229 = vdwg.mxu0
  %v231 = vsel %vm113, %v44, 0
  %v234 = vsel %vm113, %v45, 0
  %v237 = vsel %vm113, %v46, 0
  %v240 = vsel %vm113, %v47, 0
  %v243 = vsel %vm113, %v48, 0
  %v246 = vsel %vm113, %v49, 0
  %v248 = vsel %vm132, %v105, 0
  %250 = vmatprep.subr.mxu0 0.0
  %251 = vmatpush1.msra.mxu0 0.0
  %252 = vmatprep.subr.mxu0 0.0
  %253 = vmatpush1.msra.mxu0 0.0
  %254 = vmatprep.subr.mxu0 0.0
  %255 = vmatpush1.msra.mxu0 0.0
  %256 = vmatprep.subr.mxu0 0.0
  %257 = vmatpush1.msra.mxu0 0.0
  %258 = vmatprep.subr.mxu0 0.0
  %259 = vmatpush1.msra.mxu0 0.0
  %260 = vmatprep.subr.mxu0 0.0
  %261 = vmatpush1.msra.mxu0 0.0
  %262 = vmatprep.subr.mxu0 0.0
  %263 = vmatpush1.msra.mxu0 0.0
  %264 = vmatprep.subr.mxu0 0.0
  %265 = vmatpush1.msra.mxu0 0.0
  %266 = vmatprep.subr.mxu0 0.0
  %267 = vmatpush1.msra.mxu0 0.0
  %268 = vmatprep.subr.mxu0 0.0
  %269 = vmatpush1.msra.mxu0 0.0
  %270 = vmatprep.subr.mxu0 0.0
  %271 = vmatpush1.msra.mxu0 0.0
  %272 = vmatprep.subr.mxu0 0.0
  %273 = vmatpush1.msra.mxu0 0.0
  %274 = vmatprep.subr.mxu0 0.0
  %275 = vmatpush1.msra.mxu0 0.0
  %276 = vmatprep.subr.mxu0 0.0
  %277 = vmatpush1.msra.mxu0 0.0
  %278 = vmatprep.subr.mxu0 0.0
  %279 = vmatpush1.msra.mxu0 %v248
  %280 = vmatprep.subr.mxu0 0.0
  %281 = vmatpush1.msra.mxu0 %v104
  %282 = vmatprep.subr.mxu0 0.0
  %283 = vmatpush2.msra.mxu0 0.0
  %284 = vmatprep.subr.mxu0 0.0
  %285 = vmatpush2.msra.mxu0 0.0
  %286 = vmatprep.subr.mxu0 0.0
  %287 = vmatpush2.msra.mxu0 0.0
  %288 = vmatprep.subr.mxu0 0.0
  %289 = vmatpush2.msra.mxu0 0.0
  %290 = vmatprep.subr.mxu0 0.0
  %291 = vmatpush2.msra.mxu0 0.0
  %292 = vmatprep.subr.mxu0 0.0
  %293 = vmatpush2.msra.mxu0 0.0
  %294 = vmatprep.subr.mxu0 0.0
  %295 = vmatpush2.msra.mxu0 0.0
  %296 = vmatprep.subr.mxu0 0.0
  %297 = vmatpush2.msra.mxu0 0.0
  %298 = vmatprep.subr.mxu0 0.0
  %299 = vmatpush2.msra.mxu0 0.0
  %300 = vmatprep.subr.mxu0 0.0
  %301 = vmatpush2.msra.mxu0 0.0
  %302 = vmatprep.subr.mxu0 0.0
  %303 = vmatpush2.msra.mxu0 0.0
  %304 = vmatprep.subr.mxu0 0.0
  %305 = vmatpush2.msra.mxu0 0.0
  %306 = vmatprep.subr.mxu0 0.0
  %307 = vmatpush2.msra.mxu0 0.0
  %308 = vmatprep.subr.mxu0 0.0
  %309 = vmatpush2.msra.mxu0 0.0
  %310 = vmatprep.subr.mxu0 0.0
  %311 = vmatpush2.msra.mxu0 0.0
  %312 = vmatprep.subr.mxu0 0.0
  %313 = vmatpush2.msra.mxu0 0.0
  %314 = vmatprep.mubr.f32.mxu0 0.0
  %315 = vmatmul.mubr.f32.gmra.mxu0 %v231
  %v316 = vpop.f32.mrf.mxu0
  %v317 = vadd.f32 %v202, %v316
  %v318 = vpop.f32.mrf.mxu0
  %319 = vmatprep.mubr.f32.mxu0 0.0
  %320 = vmatmul.mubr.f32.gmra.mxu0 %v234
  %v321 = vpop.f32.mrf.mxu0
  %v322 = vadd.f32 %v207, %v321
  %v323 = vpop.f32.mrf.mxu0
  %324 = vmatprep.mubr.f32.mxu0 0.0
  %325 = vmatmul.mubr.f32.gmra.mxu0 %v237
  %v326 = vpop.f32.mrf.mxu0
  %v327 = vadd.f32 %v212, %v326
  %v328 = vpop.f32.mrf.mxu0
  %329 = vmatprep.mubr.f32.mxu0 0.0
  %330 = vmatmul.mubr.f32.gmra.mxu0 %v240
  %v331 = vpop.f32.mrf.mxu0
  %v332 = vadd.f32 %v217, %v331
  %v333 = vpop.f32.mrf.mxu0
  %334 = vmatprep.mubr.f32.mxu0 0.0
  %335 = vmatmul.mubr.f32.gmra.mxu0 %v243
  %v336 = vpop.f32.mrf.mxu0
  %v337 = vadd.f32 %v222, %v336
  %v338 = vpop.f32.mrf.mxu0
  %339 = vmatprep.mubr.f32.mxu0 0.0
  %340 = vmatmul.mubr.f32.gmra.mxu0 %v246
  %v341 = vpop.f32.mrf.mxu0
  %v342 = vadd.f32 %v227, %v341
  %v343 = vpop.f32.mrf.mxu0
  %344 = vdwg.mxu0
  %345 = vrot.lane.b32.xlu0 %v104, 126
  %v346 = vpop.permute.xlu0 %345
  %347 = vrot.lane.b32.xlu0 %v105, 126
  %v348 = vpop.permute.xlu0 %347
  %v351 = vsel %vm113, %v58, 0
  %v354 = vsel %vm113, %v59, 0
  %v357 = vsel %vm113, %v60, 0
  %v360 = vsel %vm113, %v61, 0
  %v363 = vsel %vm113, %v62, 0
  %v366 = vsel %vm113, %v63, 0
  %v368 = vsel %vm132, %v348, 0
  %370 = vmatprep.subr.mxu0 0.0
  %371 = vmatpush1.msra.mxu0 0.0
  %372 = vmatprep.subr.mxu0 0.0
  %373 = vmatpush1.msra.mxu0 0.0
  %374 = vmatprep.subr.mxu0 0.0
  %375 = vmatpush1.msra.mxu0 0.0
  %376 = vmatprep.subr.mxu0 0.0
  %377 = vmatpush1.msra.mxu0 0.0
  %378 = vmatprep.subr.mxu0 0.0
  %379 = vmatpush1.msra.mxu0 0.0
  %380 = vmatprep.subr.mxu0 0.0
  %381 = vmatpush1.msra.mxu0 0.0
  %382 = vmatprep.subr.mxu0 0.0
  %383 = vmatpush1.msra.mxu0 0.0
  %384 = vmatprep.subr.mxu0 0.0
  %385 = vmatpush1.msra.mxu0 0.0
  %386 = vmatprep.subr.mxu0 0.0
  %387 = vmatpush1.msra.mxu0 0.0
  %388 = vmatprep.subr.mxu0 0.0
  %389 = vmatpush1.msra.mxu0 0.0
  %390 = vmatprep.subr.mxu0 0.0
  %391 = vmatpush1.msra.mxu0 0.0
  %392 = vmatprep.subr.mxu0 0.0
  %393 = vmatpush1.msra.mxu0 0.0
  %394 = vmatprep.subr.mxu0 0.0
  %395 = vmatpush1.msra.mxu0 0.0
  %396 = vmatprep.subr.mxu0 0.0
  %397 = vmatpush1.msra.mxu0 0.0
  %398 = vmatprep.subr.mxu0 0.0
  %399 = vmatpush1.msra.mxu0 %v368
  %400 = vmatprep.subr.mxu0 0.0
  %401 = vmatpush1.msra.mxu0 %v346
  %402 = vmatprep.subr.mxu0 0.0
  %403 = vmatpush2.msra.mxu0 0.0
  %404 = vmatprep.subr.mxu0 0.0
  %405 = vmatpush2.msra.mxu0 0.0
  %406 = vmatprep.subr.mxu0 0.0
  %407 = vmatpush2.msra.mxu0 0.0
  %408 = vmatprep.subr.mxu0 0.0
  %409 = vmatpush2.msra.mxu0 0.0
  %410 = vmatprep.subr.mxu0 0.0
  %411 = vmatpush2.msra.mxu0 0.0
  %412 = vmatprep.subr.mxu0 0.0
  %413 = vmatpush2.msra.mxu0 0.0
  %414 = vmatprep.subr.mxu0 0.0
  %415 = vmatpush2.msra.mxu0 0.0
  %416 = vmatprep.subr.mxu0 0.0
  %417 = vmatpush2.msra.mxu0 0.0
  %418 = vmatprep.subr.mxu0 0.0
  %419 = vmatpush2.msra.mxu0 0.0
  %420 = vmatprep.subr.mxu0 0.0
  %421 = vmatpush2.msra.mxu0 0.0
  %422 = vmatprep.subr.mxu0 0.0
  %423 = vmatpush2.msra.mxu0 0.0
  %424 = vmatprep.subr.mxu0 0.0
  %425 = vmatpush2.msra.mxu0 0.0
  %426 = vmatprep.subr.mxu0 0.0
  %427 = vmatpush2.msra.mxu0 0.0
  %428 = vmatprep.subr.mxu0 0.0
  %429 = vmatpush2.msra.mxu0 0.0
  %430 = vmatprep.subr.mxu0 0.0
  %431 = vmatpush2.msra.mxu0 0.0
  %432 = vmatprep.subr.mxu0 0.0
  %433 = vmatpush2.msra.mxu0 0.0
  %434 = vmatprep.mubr.f32.mxu0 0.0
  %435 = vmatmul.mubr.f32.gmra.mxu0 %v351
  %v436 = vpop.f32.mrf.mxu0
  %v437 = vadd.f32 0.0, %v436
  %v438 = vpop.f32.mrf.mxu0
  %439 = vmatprep.mubr.f32.mxu0 0.0
  %440 = vmatmul.mubr.f32.gmra.mxu0 %v354
  %v441 = vpop.f32.mrf.mxu0
  %v442 = vadd.f32 0.0, %v441
  %v443 = vpop.f32.mrf.mxu0
  %444 = vmatprep.mubr.f32.mxu0 0.0
  %445 = vmatmul.mubr.f32.gmra.mxu0 %v357
  %v446 = vpop.f32.mrf.mxu0
  %v447 = vadd.f32 0.0, %v446
  %v448 = vpop.f32.mrf.mxu0
  %449 = vmatprep.mubr.f32.mxu0 0.0
  %450 = vmatmul.mubr.f32.gmra.mxu0 %v360
  %v451 = vpop.f32.mrf.mxu0
  %v452 = vadd.f32 0.0, %v451
  %v453 = vpop.f32.mrf.mxu0
  %454 = vmatprep.mubr.f32.mxu0 0.0
  %455 = vmatmul.mubr.f32.gmra.mxu0 %v363
  %v456 = vpop.f32.mrf.mxu0
  %v457 = vadd.f32 0.0, %v456
  %v458 = vpop.f32.mrf.mxu0
  %459 = vmatprep.mubr.f32.mxu0 0.0
  %460 = vmatmul.mubr.f32.gmra.mxu0 %v366
  %v461 = vpop.f32.mrf.mxu0
  %v462 = vadd.f32 0.0, %v461
  %v463 = vpop.f32.mrf.mxu0
  %464 = vdwg.mxu0
  %v465 = vadd.f32 %v317, %v437
  %v466 = vadd.f32 %v322, %v442
  %v467 = vadd.f32 %v327, %v447
  %v468 = vadd.f32 %v332, %v452
  %v469 = vadd.f32 %v337, %v457
  %v470 = vadd.f32 %v342, %v462
  %v472 = vsel %vm113, %v65, 0
  %v475 = vsel %vm113, %v66, 0
  %v478 = vsel %vm113, %v67, 0
  %v481 = vsel %vm113, %v68, 0
  %v484 = vsel %vm113, %v69, 0
  %v487 = vsel %vm113, %v70, 0
  %v489 = vsel %vm132, %v81, 0
  %491 = vmatprep.subr.mxu0 0.0
  %492 = vmatpush1.msra.mxu0 0.0
  %493 = vmatprep.subr.mxu0 0.0
  %494 = vmatpush1.msra.mxu0 0.0
  %495 = vmatprep.subr.mxu0 0.0
  %496 = vmatpush1.msra.mxu0 0.0
  %497 = vmatprep.subr.mxu0 0.0
  %498 = vmatpush1.msra.mxu0 0.0
  %499 = vmatprep.subr.mxu0 0.0
  %500 = vmatpush1.msra.mxu0 0.0
  %501 = vmatprep.subr.mxu0 0.0
  %502 = vmatpush1.msra.mxu0 0.0
  %503 = vmatprep.subr.mxu0 0.0
  %504 = vmatpush1.msra.mxu0 0.0
  %505 = vmatprep.subr.mxu0 0.0
  %506 = vmatpush1.msra.mxu0 0.0
  %507 = vmatprep.subr.mxu0 0.0
  %508 = vmatpush1.msra.mxu0 0.0
  %509 = vmatprep.subr.mxu0 0.0
  %510 = vmatpush1.msra.mxu0 0.0
  %511 = vmatprep.subr.mxu0 0.0
  %512 = vmatpush1.msra.mxu0 0.0
  %513 = vmatprep.subr.mxu0 0.0
  %514 = vmatpush1.msra.mxu0 0.0
  %515 = vmatprep.subr.mxu0 0.0
  %516 = vmatpush1.msra.mxu0 0.0
  %517 = vmatprep.subr.mxu0 0.0
  %518 = vmatpush1.msra.mxu0 0.0
  %519 = vmatprep.subr.mxu0 0.0
  %520 = vmatpush1.msra.mxu0 %v489
  %521 = vmatprep.subr.mxu0 0.0
  %522 = vmatpush1.msra.mxu0 %v80
  %523 = vmatprep.subr.mxu0 0.0
  %524 = vmatpush2.msra.mxu0 0.0
  %525 = vmatprep.subr.mxu0 0.0
  %526 = vmatpush2.msra.mxu0 0.0
  %527 = vmatprep.subr.mxu0 0.0
  %528 = vmatpush2.msra.mxu0 0.0
  %529 = vmatprep.subr.mxu0 0.0
  %530 = vmatpush2.msra.mxu0 0.0
  %531 = vmatprep.subr.mxu0 0.0
  %532 = vmatpush2.msra.mxu0 0.0
  %533 = vmatprep.subr.mxu0 0.0
  %534 = vmatpush2.msra.mxu0 0.0
  %535 = vmatprep.subr.mxu0 0.0
  %536 = vmatpush2.msra.mxu0 0.0
  %537 = vmatprep.subr.mxu0 0.0
  %538 = vmatpush2.msra.mxu0 0.0
  %539 = vmatprep.subr.mxu0 0.0
  %540 = vmatpush2.msra.mxu0 0.0
  %541 = vmatprep.subr.mxu0 0.0
  %542 = vmatpush2.msra.mxu0 0.0
  %543 = vmatprep.subr.mxu0 0.0
  %544 = vmatpush2.msra.mxu0 0.0
  %545 = vmatprep.subr.mxu0 0.0
  %546 = vmatpush2.msra.mxu0 0.0
  %547 = vmatprep.subr.mxu0 0.0
  %548 = vmatpush2.msra.mxu0 0.0
  %549 = vmatprep.subr.mxu0 0.0
  %550 = vmatpush2.msra.mxu0 0.0
  %551 = vmatprep.subr.mxu0 0.0
  %552 = vmatpush2.msra.mxu0 0.0
  %553 = vmatprep.subr.mxu0 0.0
  %554 = vmatpush2.msra.mxu0 0.0
  %555 = vmatprep.mubr.f32.mxu0 0.0
  %556 = vmatmul.mubr.f32.gmra.mxu0 %v472
  %v557 = vpop.f32.mrf.mxu0
  %v558 = vadd.f32 0.0, %v557
  %v559 = vpop.f32.mrf.mxu0
  %560 = vmatprep.mubr.f32.mxu0 0.0
  %561 = vmatmul.mubr.f32.gmra.mxu0 %v475
  %v562 = vpop.f32.mrf.mxu0
  %v563 = vadd.f32 0.0, %v562
  %v564 = vpop.f32.mrf.mxu0
  %565 = vmatprep.mubr.f32.mxu0 0.0
  %566 = vmatmul.mubr.f32.gmra.mxu0 %v478
  %v567 = vpop.f32.mrf.mxu0
  %v568 = vadd.f32 0.0, %v567
  %v569 = vpop.f32.mrf.mxu0
  %570 = vmatprep.mubr.f32.mxu0 0.0
  %571 = vmatmul.mubr.f32.gmra.mxu0 %v481
  %v572 = vpop.f32.mrf.mxu0
  %v573 = vadd.f32 0.0, %v572
  %v574 = vpop.f32.mrf.mxu0
  %575 = vmatprep.mubr.f32.mxu0 0.0
  %576 = vmatmul.mubr.f32.gmra.mxu0 %v484
  %v577 = vpop.f32.mrf.mxu0
  %v578 = vadd.f32 0.0, %v577
  %v579 = vpop.f32.mrf.mxu0
  %580 = vmatprep.mubr.f32.mxu0 0.0
  %581 = vmatmul.mubr.f32.gmra.mxu0 %v487
  %v582 = vpop.f32.mrf.mxu0
  %v583 = vadd.f32 0.0, %v582
  %v584 = vpop.f32.mrf.mxu0
  %585 = vdwg.mxu0
  %v586 = vadd.f32 %v465, %v558
  %v587 = vadd.f32 %v466, %v563
  %v588 = vadd.f32 %v467, %v568
  %v589 = vadd.f32 %v468, %v573
  %v590 = vadd.f32 %v469, %v578
  %v591 = vadd.f32 %v470, %v583
  %593 = vset.pattern.permute.xlu0 0
  %594 = vperm.xlu0 %593, %v71
  %v595 = vpop.permute.xlu0 %594
  %598 = vset.pattern.permute.xlu0 0
  %599 = vperm.xlu0 %598, %v72
  %v600 = vpop.permute.xlu0 %599
  %603 = vset.pattern.permute.xlu0 0
  %604 = vperm.xlu0 %603, %v73
  %v605 = vpop.permute.xlu0 %604
  %608 = vset.pattern.permute.xlu0 0
  %609 = vperm.xlu0 %608, %v74
  %v610 = vpop.permute.xlu0 %609
  %613 = vset.pattern.permute.xlu0 0
  %614 = vperm.xlu0 %613, %v75
  %v615 = vpop.permute.xlu0 %614
  %618 = vset.pattern.permute.xlu0 0
  %619 = vperm.xlu0 %618, %v76
  %v620 = vpop.permute.xlu0 %619
  %v622 = vadd.f32 %v586, %v595
  %v623 = vadd.f32 %v587, %v600
  %v624 = vadd.f32 %v588, %v605
  %v625 = vadd.f32 %v589, %v610
  %v626 = vadd.f32 %v590, %v615
  %v627 = vadd.f32 %v591, %v620
  %vm628 = vcmask 130048
  %629 = vst.msk [vmem:[%s4] sm:$0xff] %vm628, %v622
  %630 = vst.msk [vmem:[%s4 + $0x8] sm:$0xff] %vm628, %v623
  %631 = vst.msk [vmem:[%s4 + $0x10] sm:$0xff] %vm628, %v624
  %632 = vst.msk [vmem:[%s4 + $0x18] sm:$0xff] %vm628, %v625
  %633 = vst.msk [vmem:[%s4 + $0x20] sm:$0xff] %vm628, %v626
  %vm634 = vcmask 125952
  %635 = vst.msk [vmem:[%s4 + $0x28] sm:$0xf] %vm634, %v627
  %s636 = scalar_lea.vmem %s0, 16
  %v637 = vld [vmem:[%s636] sm:$0xff]
  %v638 = vld [vmem:[%s636 + $0x8] sm:$0x7]
  %s639 = scalar_lea.vmem %s40, 16
  %v640 = vld [vmem:[%s639] sm:$0xff]
  %v641 = vld [vmem:[%s639 + $0x8] sm:$0x7]
  %v642 = vmul.f32 %v640, %v84
  %v643 = vmul.f32 %v641, %v84
  %646 = vrot.lane.b32.xlu0 %v642, 115
  %v647 = vpop.permute.xlu0 %646
  %648 = vrot.lane.b32.xlu0 %v643, 115
  %v649 = vpop.permute.xlu0 %648
  %654 = vrot.lane.b32.xlu0 %v637, 3
  %v655 = vpop.permute.xlu0 %654
  %656 = vrot.lane.b32.xlu0 %v638, 3
  %v657 = vpop.permute.xlu0 %656
  %v660 = vsel %vm103, %v647, %v655
  %v661 = vsel %vm103, %v649, %v657
  %664 = vrot.lane.b32.xlu0 %v660, 127
  %v665 = vpop.permute.xlu0 %664
  %666 = vrot.lane.b32.xlu0 %v661, 127
  %v667 = vpop.permute.xlu0 %666
  %v669 = vsel %vm132, %v667, 0
  %671 = vmatprep.subr.mxu0 0.0
  %672 = vmatpush1.msra.mxu0 0.0
  %673 = vmatprep.subr.mxu0 0.0
  %674 = vmatpush1.msra.mxu0 0.0
  %675 = vmatprep.subr.mxu0 0.0
  %676 = vmatpush1.msra.mxu0 0.0
  %677 = vmatprep.subr.mxu0 0.0
  %678 = vmatpush1.msra.mxu0 0.0
  %679 = vmatprep.subr.mxu0 0.0
  %680 = vmatpush1.msra.mxu0 0.0
  %681 = vmatprep.subr.mxu0 0.0
  %682 = vmatpush1.msra.mxu0 0.0
  %683 = vmatprep.subr.mxu0 0.0
  %684 = vmatpush1.msra.mxu0 0.0
  %685 = vmatprep.subr.mxu0 0.0
  %686 = vmatpush1.msra.mxu0 0.0
  %687 = vmatprep.subr.mxu0 0.0
  %688 = vmatpush1.msra.mxu0 0.0
  %689 = vmatprep.subr.mxu0 0.0
  %690 = vmatpush1.msra.mxu0 0.0
  %691 = vmatprep.subr.mxu0 0.0
  %692 = vmatpush1.msra.mxu0 0.0
  %693 = vmatprep.subr.mxu0 0.0
  %694 = vmatpush1.msra.mxu0 0.0
  %695 = vmatprep.subr.mxu0 0.0
  %696 = vmatpush1.msra.mxu0 0.0
  %697 = vmatprep.subr.mxu0 0.0
  %698 = vmatpush1.msra.mxu0 0.0
  %699 = vmatprep.subr.mxu0 0.0
  %700 = vmatpush1.msra.mxu0 %v669
  %701 = vmatprep.subr.mxu0 0.0
  %702 = vmatpush1.msra.mxu0 %v665
  %703 = vmatprep.subr.mxu0 0.0
  %704 = vmatpush2.msra.mxu0 0.0
  %705 = vmatprep.subr.mxu0 0.0
  %706 = vmatpush2.msra.mxu0 0.0
  %707 = vmatprep.subr.mxu0 0.0
  %708 = vmatpush2.msra.mxu0 0.0
  %709 = vmatprep.subr.mxu0 0.0
  %710 = vmatpush2.msra.mxu0 0.0
  %711 = vmatprep.subr.mxu0 0.0
  %712 = vmatpush2.msra.mxu0 0.0
  %713 = vmatprep.subr.mxu0 0.0
  %714 = vmatpush2.msra.mxu0 0.0
  %715 = vmatprep.subr.mxu0 0.0
  %716 = vmatpush2.msra.mxu0 0.0
  %717 = vmatprep.subr.mxu0 0.0
  %718 = vmatpush2.msra.mxu0 0.0
  %719 = vmatprep.subr.mxu0 0.0
  %720 = vmatpush2.msra.mxu0 0.0
  %721 = vmatprep.subr.mxu0 0.0
  %722 = vmatpush2.msra.mxu0 0.0
  %723 = vmatprep.subr.mxu0 0.0
  %724 = vmatpush2.msra.mxu0 0.0
  %725 = vmatprep.subr.mxu0 0.0
  %726 = vmatpush2.msra.mxu0 0.0
  %727 = vmatprep.subr.mxu0 0.0
  %728 = vmatpush2.msra.mxu0 0.0
  %729 = vmatprep.subr.mxu0 0.0
  %730 = vmatpush2.msra.mxu0 0.0
  %731 = vmatprep.subr.mxu0 0.0
  %732 = vmatpush2.msra.mxu0 0.0
  %733 = vmatprep.subr.mxu0 0.0
  %734 = vmatpush2.msra.mxu0 0.0
  %735 = vmatprep.mubr.f32.mxu0 0.0
  %736 = vmatmul.mubr.f32.gmra.mxu0 %v115
  %v737 = vpop.f32.mrf.mxu0
  %v738 = vadd.f32 0.0, %v737
  %v739 = vpop.f32.mrf.mxu0
  %740 = vmatprep.mubr.f32.mxu0 0.0
  %741 = vmatmul.mubr.f32.gmra.mxu0 %v118
  %v742 = vpop.f32.mrf.mxu0
  %v743 = vadd.f32 0.0, %v742
  %v744 = vpop.f32.mrf.mxu0
  %745 = vmatprep.mubr.f32.mxu0 0.0
  %746 = vmatmul.mubr.f32.gmra.mxu0 %v121
  %v747 = vpop.f32.mrf.mxu0
  %v748 = vadd.f32 0.0, %v747
  %v749 = vpop.f32.mrf.mxu0
  %750 = vmatprep.mubr.f32.mxu0 0.0
  %751 = vmatmul.mubr.f32.gmra.mxu0 %v124
  %v752 = vpop.f32.mrf.mxu0
  %v753 = vadd.f32 0.0, %v752
  %v754 = vpop.f32.mrf.mxu0
  %755 = vmatprep.mubr.f32.mxu0 0.0
  %756 = vmatmul.mubr.f32.gmra.mxu0 %v127
  %v757 = vpop.f32.mrf.mxu0
  %v758 = vadd.f32 0.0, %v757
  %v759 = vpop.f32.mrf.mxu0
  %760 = vmatprep.mubr.f32.mxu0 0.0
  %761 = vmatmul.mubr.f32.gmra.mxu0 %v130
  %v762 = vpop.f32.mrf.mxu0
  %v763 = vadd.f32 0.0, %v762
  %v764 = vpop.f32.mrf.mxu0
  %765 = vdwg.mxu0
  %v766 = vsel %vm132, %v661, 0
  %768 = vmatprep.subr.mxu0 0.0
  %769 = vmatpush1.msra.mxu0 0.0
  %770 = vmatprep.subr.mxu0 0.0
  %771 = vmatpush1.msra.mxu0 0.0
  %772 = vmatprep.subr.mxu0 0.0
  %773 = vmatpush1.msra.mxu0 0.0
  %774 = vmatprep.subr.mxu0 0.0
  %775 = vmatpush1.msra.mxu0 0.0
  %776 = vmatprep.subr.mxu0 0.0
  %777 = vmatpush1.msra.mxu0 0.0
  %778 = vmatprep.subr.mxu0 0.0
  %779 = vmatpush1.msra.mxu0 0.0
  %780 = vmatprep.subr.mxu0 0.0
  %781 = vmatpush1.msra.mxu0 0.0
  %782 = vmatprep.subr.mxu0 0.0
  %783 = vmatpush1.msra.mxu0 0.0
  %784 = vmatprep.subr.mxu0 0.0
  %785 = vmatpush1.msra.mxu0 0.0
  %786 = vmatprep.subr.mxu0 0.0
  %787 = vmatpush1.msra.mxu0 0.0
  %788 = vmatprep.subr.mxu0 0.0
  %789 = vmatpush1.msra.mxu0 0.0
  %790 = vmatprep.subr.mxu0 0.0
  %791 = vmatpush1.msra.mxu0 0.0
  %792 = vmatprep.subr.mxu0 0.0
  %793 = vmatpush1.msra.mxu0 0.0
  %794 = vmatprep.subr.mxu0 0.0
  %795 = vmatpush1.msra.mxu0 0.0
  %796 = vmatprep.subr.mxu0 0.0
  %797 = vmatpush1.msra.mxu0 %v766
  %798 = vmatprep.subr.mxu0 0.0
  %799 = vmatpush1.msra.mxu0 %v660
  %800 = vmatprep.subr.mxu0 0.0
  %801 = vmatpush2.msra.mxu0 0.0
  %802 = vmatprep.subr.mxu0 0.0
  %803 = vmatpush2.msra.mxu0 0.0
  %804 = vmatprep.subr.mxu0 0.0
  %805 = vmatpush2.msra.mxu0 0.0
  %806 = vmatprep.subr.mxu0 0.0
  %807 = vmatpush2.msra.mxu0 0.0
  %808 = vmatprep.subr.mxu0 0.0
  %809 = vmatpush2.msra.mxu0 0.0
  %810 = vmatprep.subr.mxu0 0.0
  %811 = vmatpush2.msra.mxu0 0.0
  %812 = vmatprep.subr.mxu0 0.0
  %813 = vmatpush2.msra.mxu0 0.0
  %814 = vmatprep.subr.mxu0 0.0
  %815 = vmatpush2.msra.mxu0 0.0
  %816 = vmatprep.subr.mxu0 0.0
  %817 = vmatpush2.msra.mxu0 0.0
  %818 = vmatprep.subr.mxu0 0.0
  %819 = vmatpush2.msra.mxu0 0.0
  %820 = vmatprep.subr.mxu0 0.0
  %821 = vmatpush2.msra.mxu0 0.0
  %822 = vmatprep.subr.mxu0 0.0
  %823 = vmatpush2.msra.mxu0 0.0
  %824 = vmatprep.subr.mxu0 0.0
  %825 = vmatpush2.msra.mxu0 0.0
  %826 = vmatprep.subr.mxu0 0.0
  %827 = vmatpush2.msra.mxu0 0.0
  %828 = vmatprep.subr.mxu0 0.0
  %829 = vmatpush2.msra.mxu0 0.0
  %830 = vmatprep.subr.mxu0 0.0
  %831 = vmatpush2.msra.mxu0 0.0
  %832 = vmatprep.mubr.f32.mxu0 0.0
  %833 = vmatmul.mubr.f32.gmra.mxu0 %v231
  %v834 = vpop.f32.mrf.mxu0
  %v835 = vadd.f32 %v738, %v834
  %v836 = vpop.f32.mrf.mxu0
  %837 = vmatprep.mubr.f32.mxu0 0.0
  %838 = vmatmul.mubr.f32.gmra.mxu0 %v234
  %v839 = vpop.f32.mrf.mxu0
  %v840 = vadd.f32 %v743, %v839
  %v841 = vpop.f32.mrf.mxu0
  %842 = vmatprep.mubr.f32.mxu0 0.0
  %843 = vmatmul.mubr.f32.gmra.mxu0 %v237
  %v844 = vpop.f32.mrf.mxu0
  %v845 = vadd.f32 %v748, %v844
  %v846 = vpop.f32.mrf.mxu0
  %847 = vmatprep.mubr.f32.mxu0 0.0
  %848 = vmatmul.mubr.f32.gmra.mxu0 %v240
  %v849 = vpop.f32.mrf.mxu0
  %v850 = vadd.f32 %v753, %v849
  %v851 = vpop.f32.mrf.mxu0
  %852 = vmatprep.mubr.f32.mxu0 0.0
  %853 = vmatmul.mubr.f32.gmra.mxu0 %v243
  %v854 = vpop.f32.mrf.mxu0
  %v855 = vadd.f32 %v758, %v854
  %v856 = vpop.f32.mrf.mxu0
  %857 = vmatprep.mubr.f32.mxu0 0.0
  %858 = vmatmul.mubr.f32.gmra.mxu0 %v246
  %v859 = vpop.f32.mrf.mxu0
  %v860 = vadd.f32 %v763, %v859
  %v861 = vpop.f32.mrf.mxu0
  %862 = vdwg.mxu0
  %863 = vrot.lane.b32.xlu0 %v660, 126
  %v864 = vpop.permute.xlu0 %863
  %865 = vrot.lane.b32.xlu0 %v661, 126
  %v866 = vpop.permute.xlu0 %865
  %v868 = vsel %vm132, %v866, 0
  %870 = vmatprep.subr.mxu0 0.0
  %871 = vmatpush1.msra.mxu0 0.0
  %872 = vmatprep.subr.mxu0 0.0
  %873 = vmatpush1.msra.mxu0 0.0
  %874 = vmatprep.subr.mxu0 0.0
  %875 = vmatpush1.msra.mxu0 0.0
  %876 = vmatprep.subr.mxu0 0.0
  %877 = vmatpush1.msra.mxu0 0.0
  %878 = vmatprep.subr.mxu0 0.0
  %879 = vmatpush1.msra.mxu0 0.0
  %880 = vmatprep.subr.mxu0 0.0
  %881 = vmatpush1.msra.mxu0 0.0
  %882 = vmatprep.subr.mxu0 0.0
  %883 = vmatpush1.msra.mxu0 0.0
  %884 = vmatprep.subr.mxu0 0.0
  %885 = vmatpush1.msra.mxu0 0.0
  %886 = vmatprep.subr.mxu0 0.0
  %887 = vmatpush1.msra.mxu0 0.0
  %888 = vmatprep.subr.mxu0 0.0
  %889 = vmatpush1.msra.mxu0 0.0
  %890 = vmatprep.subr.mxu0 0.0
  %891 = vmatpush1.msra.mxu0 0.0
  %892 = vmatprep.subr.mxu0 0.0
  %893 = vmatpush1.msra.mxu0 0.0
  %894 = vmatprep.subr.mxu0 0.0
  %895 = vmatpush1.msra.mxu0 0.0
  %896 = vmatprep.subr.mxu0 0.0
  %897 = vmatpush1.msra.mxu0 0.0
  %898 = vmatprep.subr.mxu0 0.0
  %899 = vmatpush1.msra.mxu0 %v868
  %900 = vmatprep.subr.mxu0 0.0
  %901 = vmatpush1.msra.mxu0 %v864
  %902 = vmatprep.subr.mxu0 0.0
  %903 = vmatpush2.msra.mxu0 0.0
  %904 = vmatprep.subr.mxu0 0.0
  %905 = vmatpush2.msra.mxu0 0.0
  %906 = vmatprep.subr.mxu0 0.0
  %907 = vmatpush2.msra.mxu0 0.0
  %908 = vmatprep.subr.mxu0 0.0
  %909 = vmatpush2.msra.mxu0 0.0
  %910 = vmatprep.subr.mxu0 0.0
  %911 = vmatpush2.msra.mxu0 0.0
  %912 = vmatprep.subr.mxu0 0.0
  %913 = vmatpush2.msra.mxu0 0.0
  %914 = vmatprep.subr.mxu0 0.0
  %915 = vmatpush2.msra.mxu0 0.0
  %916 = vmatprep.subr.mxu0 0.0
  %917 = vmatpush2.msra.mxu0 0.0
  %918 = vmatprep.subr.mxu0 0.0
  %919 = vmatpush2.msra.mxu0 0.0
  %920 = vmatprep.subr.mxu0 0.0
  %921 = vmatpush2.msra.mxu0 0.0
  %922 = vmatprep.subr.mxu0 0.0
  %923 = vmatpush2.msra.mxu0 0.0
  %924 = vmatprep.subr.mxu0 0.0
  %925 = vmatpush2.msra.mxu0 0.0
  %926 = vmatprep.subr.mxu0 0.0
  %927 = vmatpush2.msra.mxu0 0.0
  %928 = vmatprep.subr.mxu0 0.0
  %929 = vmatpush2.msra.mxu0 0.0
  %930 = vmatprep.subr.mxu0 0.0
  %931 = vmatpush2.msra.mxu0 0.0
  %932 = vmatprep.subr.mxu0 0.0
  %933 = vmatpush2.msra.mxu0 0.0
  %934 = vmatprep.mubr.f32.mxu0 0.0
  %935 = vmatmul.mubr.f32.gmra.mxu0 %v351
  %v936 = vpop.f32.mrf.mxu0
  %v937 = vadd.f32 0.0, %v936
  %v938 = vpop.f32.mrf.mxu0
  %939 = vmatprep.mubr.f32.mxu0 0.0
  %940 = vmatmul.mubr.f32.gmra.mxu0 %v354
  %v941 = vpop.f32.mrf.mxu0
  %v942 = vadd.f32 0.0, %v941
  %v943 = vpop.f32.mrf.mxu0
  %944 = vmatprep.mubr.f32.mxu0 0.0
  %945 = vmatmul.mubr.f32.gmra.mxu0 %v357
  %v946 = vpop.f32.mrf.mxu0
  %v947 = vadd.f32 0.0, %v946
  %v948 = vpop.f32.mrf.mxu0
  %949 = vmatprep.mubr.f32.mxu0 0.0
  %950 = vmatmul.mubr.f32.gmra.mxu0 %v360
  %v951 = vpop.f32.mrf.mxu0
  %v952 = vadd.f32 0.0, %v951
  %v953 = vpop.f32.mrf.mxu0
  %954 = vmatprep.mubr.f32.mxu0 0.0
  %955 = vmatmul.mubr.f32.gmra.mxu0 %v363
  %v956 = vpop.f32.mrf.mxu0
  %v957 = vadd.f32 0.0, %v956
  %v958 = vpop.f32.mrf.mxu0
  %959 = vmatprep.mubr.f32.mxu0 0.0
  %960 = vmatmul.mubr.f32.gmra.mxu0 %v366
  %v961 = vpop.f32.mrf.mxu0
  %v962 = vadd.f32 0.0, %v961
  %v963 = vpop.f32.mrf.mxu0
  %964 = vdwg.mxu0
  %v965 = vadd.f32 %v835, %v937
  %v966 = vadd.f32 %v840, %v942
  %v967 = vadd.f32 %v845, %v947
  %v968 = vadd.f32 %v850, %v952
  %v969 = vadd.f32 %v855, %v957
  %v970 = vadd.f32 %v860, %v962
  %v971 = vsel %vm132, %v638, 0
  %973 = vmatprep.subr.mxu0 0.0
  %974 = vmatpush1.msra.mxu0 0.0
  %975 = vmatprep.subr.mxu0 0.0
  %976 = vmatpush1.msra.mxu0 0.0
  %977 = vmatprep.subr.mxu0 0.0
  %978 = vmatpush1.msra.mxu0 0.0
  %979 = vmatprep.subr.mxu0 0.0
  %980 = vmatpush1.msra.mxu0 0.0
  %981 = vmatprep.subr.mxu0 0.0
  %982 = vmatpush1.msra.mxu0 0.0
  %983 = vmatprep.subr.mxu0 0.0
  %984 = vmatpush1.msra.mxu0 0.0
  %985 = vmatprep.subr.mxu0 0.0
  %986 = vmatpush1.msra.mxu0 0.0
  %987 = vmatprep.subr.mxu0 0.0
  %988 = vmatpush1.msra.mxu0 0.0
  %989 = vmatprep.subr.mxu0 0.0
  %990 = vmatpush1.msra.mxu0 0.0
  %991 = vmatprep.subr.mxu0 0.0
  %992 = vmatpush1.msra.mxu0 0.0
  %993 = vmatprep.subr.mxu0 0.0
  %994 = vmatpush1.msra.mxu0 0.0
  %995 = vmatprep.subr.mxu0 0.0
  %996 = vmatpush1.msra.mxu0 0.0
  %997 = vmatprep.subr.mxu0 0.0
  %998 = vmatpush1.msra.mxu0 0.0
  %999 = vmatprep.subr.mxu0 0.0
  %1000 = vmatpush1.msra.mxu0 0.0
  %1001 = vmatprep.subr.mxu0 0.0
  %1002 = vmatpush1.msra.mxu0 %v971
  %1003 = vmatprep.subr.mxu0 0.0
  %1004 = vmatpush1.msra.mxu0 %v637
  %1005 = vmatprep.subr.mxu0 0.0
  %1006 = vmatpush2.msra.mxu0 0.0
  %1007 = vmatprep.subr.mxu0 0.0
  %1008 = vmatpush2.msra.mxu0 0.0
  %1009 = vmatprep.subr.mxu0 0.0
  %1010 = vmatpush2.msra.mxu0 0.0
  %1011 = vmatprep.subr.mxu0 0.0
  %1012 = vmatpush2.msra.mxu0 0.0
  %1013 = vmatprep.subr.mxu0 0.0
  %1014 = vmatpush2.msra.mxu0 0.0
  %1015 = vmatprep.subr.mxu0 0.0
  %1016 = vmatpush2.msra.mxu0 0.0
  %1017 = vmatprep.subr.mxu0 0.0
  %1018 = vmatpush2.msra.mxu0 0.0
  %1019 = vmatprep.subr.mxu0 0.0
  %1020 = vmatpush2.msra.mxu0 0.0
  %1021 = vmatprep.subr.mxu0 0.0
  %1022 = vmatpush2.msra.mxu0 0.0
  %1023 = vmatprep.subr.mxu0 0.0
  %1024 = vmatpush2.msra.mxu0 0.0
  %1025 = vmatprep.subr.mxu0 0.0
  %1026 = vmatpush2.msra.mxu0 0.0
  %1027 = vmatprep.subr.mxu0 0.0
  %1028 = vmatpush2.msra.mxu0 0.0
  %1029 = vmatprep.subr.mxu0 0.0
  %1030 = vmatpush2.msra.mxu0 0.0
  %1031 = vmatprep.subr.mxu0 0.0
  %1032 = vmatpush2.msra.mxu0 0.0
  %1033 = vmatprep.subr.mxu0 0.0
  %1034 = vmatpush2.msra.mxu0 0.0
  %1035 = vmatprep.subr.mxu0 0.0
  %1036 = vmatpush2.msra.mxu0 0.0
  %1037 = vmatprep.mubr.f32.mxu0 0.0
  %1038 = vmatmul.mubr.f32.gmra.mxu0 %v472
  %v1039 = vpop.f32.mrf.mxu0
  %v1040 = vadd.f32 0.0, %v1039
  %v1041 = vpop.f32.mrf.mxu0
  %1042 = vmatprep.mubr.f32.mxu0 0.0
  %1043 = vmatmul.mubr.f32.gmra.mxu0 %v475
  %v1044 = vpop.f32.mrf.mxu0
  %v1045 = vadd.f32 0.0, %v1044
  %v1046 = vpop.f32.mrf.mxu0
  %1047 = vmatprep.mubr.f32.mxu0 0.0
  %1048 = vmatmul.mubr.f32.gmra.mxu0 %v478
  %v1049 = vpop.f32.mrf.mxu0
  %v1050 = vadd.f32 0.0, %v1049
  %v1051 = vpop.f32.mrf.mxu0
  %1052 = vmatprep.mubr.f32.mxu0 0.0
  %1053 = vmatmul.mubr.f32.gmra.mxu0 %v481
  %v1054 = vpop.f32.mrf.mxu0
  %v1055 = vadd.f32 0.0, %v1054
  %v1056 = vpop.f32.mrf.mxu0
  %1057 = vmatprep.mubr.f32.mxu0 0.0
  %1058 = vmatmul.mubr.f32.gmra.mxu0 %v484
  %v1059 = vpop.f32.mrf.mxu0
  %v1060 = vadd.f32 0.0, %v1059
  %v1061 = vpop.f32.mrf.mxu0
  %1062 = vmatprep.mubr.f32.mxu0 0.0
  %1063 = vmatmul.mubr.f32.gmra.mxu0 %v487
  %v1064 = vpop.f32.mrf.mxu0
  %v1065 = vadd.f32 0.0, %v1064
  %v1066 = vpop.f32.mrf.mxu0
  %1067 = vdwg.mxu0
  %v1068 = vadd.f32 %v965, %v1040
  %v1069 = vadd.f32 %v966, %v1045
  %v1070 = vadd.f32 %v967, %v1050
  %v1071 = vadd.f32 %v968, %v1055
  %v1072 = vadd.f32 %v969, %v1060
  %v1073 = vadd.f32 %v970, %v1065
  %v1074 = vadd.f32 %v1068, %v595
  %v1075 = vadd.f32 %v1069, %v600
  %v1076 = vadd.f32 %v1070, %v605
  %v1077 = vadd.f32 %v1071, %v610
  %v1078 = vadd.f32 %v1072, %v615
  %v1079 = vadd.f32 %v1073, %v620
  %s1080 = scalar_lea.vmem %s4, 48
  %1081 = vst.msk [vmem:[%s1080] sm:$0xff] %vm628, %v1074
  %1082 = vst.msk [vmem:[%s1080 + $0x8] sm:$0xff] %vm628, %v1075
  %1083 = vst.msk [vmem:[%s1080 + $0x10] sm:$0xff] %vm628, %v1076
  %1084 = vst.msk [vmem:[%s1080 + $0x18] sm:$0xff] %vm628, %v1077
  %1085 = vst.msk [vmem:[%s1080 + $0x20] sm:$0xff] %vm628, %v1078
  %1086 = vst.msk [vmem:[%s1080 + $0x28] sm:$0xf] %vm634, %v1079
  // Predicated region
  $region18: #{tpu_custom_call.1} parent=0 // pred_check
    _
  $region19: #{tpu_custom_call.1} parent=0 // pred_check_branch
    %1088 = sbr.rel (0) target = $region21
  $region20: #{tpu_custom_call.1} parent=0 // pred_region
    _
  $region21: #{tpu_custom_call.1} parent=0 // pred_fallthru
    _
  // Predicated region
  $region22: #{tpu_custom_call.1} parent=0 // pred_check
    _
  $region23: #{tpu_custom_call.1} parent=0 // pred_check_branch
    %1090 = sbr.rel (0) target = $region25
  $region24: #{tpu_custom_call.1} parent=0 // pred_region
    _
  $region25: #{tpu_custom_call.1} parent=0 // pred_fallthru
    _

</llo_original>
